<compile_context>
chip_gen: v7x
topology: tpu7x:2x2x1
jax: 0.10.0
libtpu: 0.0.40
codegen_flags: <defaults>
</compile_context>

<pallas_src>
import math

import jax
import jax.numpy as jnp
from jax import lax
from jax.experimental import pallas as pl
from jax.experimental.pallas import tpu as pltpu


def _cdiv(a, b):
    return -(-a // b)


def _pos_enc_kernel(x_ref, pos_ref, o_ref):
    # x_ref / o_ref: (b_tile, t_tile, Dv) VMEM blocks; pos_ref: (t_tile, Dv).
    o_ref[...] = x_ref[...] + pos_ref[...][None, :, :]


def _device_profile():
    """(target block bytes, scoped VMEM limit bytes, min grid steps) for this TPU."""
    vmem_bytes = 128 * 1024 * 1024
    try:
        info = pltpu.get_tpu_info()
        vmem_bytes = int(getattr(info, "vmem_capacity_bytes", vmem_bytes))
    except Exception:
        pass  # interpret mode / non-TPU backend: fall back to conservative defaults
    if vmem_bytes <= 64 * 1024 * 1024:
        # v7x-class: 64 MiB VMEM per TC, 2 TCs per chip -> biggest tiles, but leave
        # headroom below the physical VMEM, and aim for >= 2 grid steps.
        return 6 << 20, 48 * 1024 * 1024, 2
    # v5e / v6e: 128 MiB physical VMEM, single TensorCore.
    return 8 << 20, 96 * 1024 * 1024, 1


def _choose_tiles(B, Tv, Dv, itemsize, target_bytes, min_steps):
    """Pick (b_tile, t_tile) so one x block is ~target_bytes with a clean layout."""
    # Sublane quantum: 8 rows for 4-byte, 16 for 2-byte, 32 for 1-byte dtypes.
    quantum = max(8, 32 // max(1, itemsize))
    row_bytes = Dv * itemsize  # one (1, 1, Dv) row

    # Tile B so that even a quantum-deep block fits the target.
    if B * row_bytes * quantum <= target_bytes:
        b_tile = B
    else:
        b_tile = max(1, min(B, target_bytes // (row_bytes * quantum)))

    # Tile T: a multiple of the quantum (or the full dim), largest <= target.
    if Tv <= quantum:
        t_tile = Tv
    else:
        want = max(quantum, target_bytes // max(1, b_tile * row_bytes))
        if want >= Tv:
            t_tile = Tv
        else:
            t_tile = min(Tv, max(quantum, (want // quantum) * quantum))

    # v7x: make sure a non-trivial problem yields >= 2 grid steps (2 TensorCores).
    total_bytes = B * Tv * Dv * itemsize
    steps = _cdiv(B, b_tile) * _cdiv(Tv, t_tile)
    if steps < min_steps and total_bytes > (1 << 20):
        if Tv > quantum:
            half = _cdiv(Tv, 2)
            t_tile = max(quantum, _cdiv(half, quantum) * quantum)
        elif B >= 2:
            b_tile = _cdiv(B, 2)

    return b_tile, t_tile


def positional_encoding(x, pos_table, offset=0):
    """x: (B, T, D); pos_table: (max_len, D) -> x + pos_table[offset : offset + T]."""
    B, T, D = x.shape
    max_len, Dp = pos_table.shape
    assert Dp == D, "pos_table feature dim must match x"
    if isinstance(offset, int):
        if offset < 0 or offset + T > max_len:
            raise ValueError(
                f"offset + T ({offset}+{T}) exceeds pos_table max_len ({max_len})"
            )
    # NOTE: for a traced offset, lax.dynamic_slice clamps the start index instead
    # of raising (the PyTorch module would error on out-of-range indices).

    # Contiguous "embedding lookup" = slice of the table.  Cast to x.dtype so the
    # kernel is a pure add (PyTorch's broadcast add would promote bf16 x + f32
    # table to f32; we deliberately keep x.dtype).
    # TODO(synk): fuse this slice/cast into the pallas_call (scalar-prefetch offset
    # + manual DMA from an ANY-space table) to drop one HBM pass over the slice.
    pos = lax.dynamic_slice(pos_table, (offset, 0), (T, D)).astype(x.dtype)

    # Lane-densify: fold g time steps into the lane dim when D % 128 != 0, padding
    # T up to a multiple of g (a few padded rows beat masked sub-128-lane stores).
    g, pad_t = 1, 0
    if D % 128 != 0:
        g = 128 // math.gcd(D, 128)
        pad_t = (-T) % g
    Tp = T + pad_t
    if pad_t:
        x = jnp.pad(x, ((0, 0), (0, pad_t), (0, 0)))
        pos = jnp.pad(pos, ((0, pad_t), (0, 0)))
    Tv, Dv = Tp // g, D * g
    xv = x.reshape(B, Tv, Dv) if g != 1 else x
    posv = pos.reshape(Tv, Dv) if g != 1 else pos

    target_bytes, vmem_limit, min_steps = _device_profile()
    itemsize = jnp.dtype(x.dtype).itemsize
    b_tile, t_tile = _choose_tiles(B, Tv, Dv, itemsize, target_bytes, min_steps)
    grid = (_cdiv(B, b_tile), _cdiv(Tv, t_tile))

    out = pl.pallas_call(
        _pos_enc_kernel,
        out_shape=jax.ShapeDtypeStruct((B, Tv, Dv), x.dtype),
        grid=grid,
        in_specs=[
            pl.BlockSpec((b_tile, t_tile, Dv), lambda b, t: (b, t, 0)),
            pl.BlockSpec((t_tile, Dv), lambda b, t: (t, 0)),
        ],
        out_specs=pl.BlockSpec((b_tile, t_tile, Dv), lambda b, t: (b, t, 0)),
        compiler_params=pltpu.CompilerParams(
            dimension_semantics=("parallel", "parallel"),
            vmem_limit_bytes=vmem_limit,
        ),
    )(xv, posv)

    if g != 1:
        out = out.reshape(B, Tp, D)
        if pad_t:
            out = out[:, :T, :]
    return out


if __name__ == "__main__":
    # Small shapes consistent with the module: batch=2, seq=16, d_model=32, max_len=64.
    B, T, D, MAX_LEN = 2, 16, 32, 64
    offset = 3

    key = jax.random.PRNGKey(0)
    kx, kw = jax.random.split(key)
    x = jax.random.normal(kx, (B, T, D), dtype=jnp.float32)
    # Deterministic stand-in for the nn.Embedding weight (normal(0, 1), PyTorch default).
    pos_table = jax.random.normal(kw, (MAX_LEN, D), dtype=jnp.float32)

    out = jax.block_until_ready(positional_encoding(x, pos_table, offset=offset))

    # Reference (plain JAX) check of exact semantics.
    positions = jnp.arange(T) + offset
    ref = x + pos_table[positions][None, :, :]
    assert out.shape == (B, T, D)
    assert jnp.allclose(out, ref, atol=1e-6), "mismatch vs reference"

    print("KERNEL_OK")
</pallas_src>

<mosaic_0001>
module attributes {stable_mosaic.version = 11 : i64} {
  func.func @_pos_enc_kernel(%arg0: i32, %arg1: i32, %arg2: memref<2x4x128xf32, #tpu.memory_space<vmem>>, %arg3: memref<4x128xf32, #tpu.memory_space<vmem>>, %arg4: memref<2x4x128xf32, #tpu.memory_space<vmem>>) attributes {dimension_semantics = [#tpu.dimension_semantics<parallel>, #tpu.dimension_semantics<parallel>], iteration_bounds = array<i64: 1, 1>, scalar_prefetch = 0 : i64, scratch_operands = 0 : i64, tpu.core_type = #tpu.core_type<tc>, window_params = [{transform_indices = @transform_0, window_bounds = array<i64: 2, 4, 128>}, {transform_indices = @transform_1, window_bounds = array<i64: 4, 128>}, {transform_indices = @transform_2, window_bounds = array<i64: 2, 4, 128>}]} {
    %c0 = arith.constant 0 : index
    %c0_0 = arith.constant 0 : index
    %c0_1 = arith.constant 0 : index
    %0 = vector.load %arg2[%c0, %c0_0, %c0_1] : memref<2x4x128xf32, #tpu.memory_space<vmem>>, vector<2x4x128xf32>
    %c0_2 = arith.constant 0 : index
    %c0_3 = arith.constant 0 : index
    %1 = vector.load %arg3[%c0_2, %c0_3] : memref<4x128xf32, #tpu.memory_space<vmem>>, vector<4x128xf32>
    %2 = vector.shape_cast %1 : vector<4x128xf32> to vector<1x4x128xf32>
    %3 = vector.broadcast %2 : vector<1x4x128xf32> to vector<2x4x128xf32>
    %4 = arith.addf %0, %3 : vector<2x4x128xf32>
    %c0_4 = arith.constant 0 : index
    %c0_5 = arith.constant 0 : index
    %c0_6 = arith.constant 0 : index
    %5 = vector.load %arg4[%c0_4, %c0_5, %c0_6] : memref<2x4x128xf32, #tpu.memory_space<vmem>>, vector<2x4x128xf32>
    tpu.vector_store %arg4[%c0_4, %c0_5, %c0_6], %4 {strides = array<i32>} : memref<2x4x128xf32, #tpu.memory_space<vmem>>, vector<2x4x128xf32>,
    return
  }
  func.func @transform_0(%arg0: i32, %arg1: i32) -> (i32, i32, i32) {
    %c0_i32 = arith.constant 0 : i32
    %c0_i32_0 = arith.constant 0 : i32
    return %arg0, %arg1, %c0_i32 : i32, i32, i32
  }
  func.func @transform_1(%arg0: i32, %arg1: i32) -> (i32, i32) {
    %c0_i32 = arith.constant 0 : i32
    %c0_i32_0 = arith.constant 0 : i32
    return %arg1, %c0_i32 : i32, i32
  }
  func.func @transform_2(%arg0: i32, %arg1: i32) -> (i32, i32, i32) {
    %c0_i32 = arith.constant 0 : i32
    %c0_i32_0 = arith.constant 0 : i32
    return %arg0, %arg1, %c0_i32 : i32, i32, i32
  }
}

</mosaic_0001>

<llo_original>
// kernel: tpu_custom_call.1
$region0: #{tpu_custom_call.1}
  #allocation0 [shape = 'u32[]', space=smem, size = 0x4, offset = 0x4, fixed_abs, tag = 'smem constant byte address 0x4 - core index']
  #allocation1 [shape = 'u32[144,128]{1,0:T(1,128)}', space=vmem, size = 0x12000, scoped, tag = 'internal scratch']
  %s0 = inlined_call_operand.hbm [shape: f32[2,4,128], index: 0, kind: input, shape index: {}]
  %s1 = inlined_call_operand.hbm [shape: f32[4,128], index: 1, kind: input, shape index: {}]
  %s2 = inlined_call_operand.hbm [shape: f32[2,4,128], index: 2, kind: output, shape index: {}]
  %s3 = sld [smem:[#allocation0]]
  $region26: #{tpu_custom_call.1} parent=0
    _
  %s5 = ssub.s32 1, %s3
  %s6 = scalar_select 0, %s5, %s3
  $region1: #{tpu_custom_call.1} parent=0
    #allocation2 [shape = 'u8[4096]{0}', space=vmem, size = 0x1000, scoped, tag = 'input window, operand 0, single buffered']
    #allocation3 [shape = 's32[1]{0}', space=sflag, size = 0x4, scoped, tag = 'scoped memory for tpu_custom_call.1']
    #allocation4 [shape = 's32[1]{0}', space=sflag, size = 0x4, scoped, tag = 'scoped memory for tpu_custom_call.1']
    #allocation5 [shape = 'u8[2048]{0}', space=vmem, size = 0x800, scoped, tag = 'input window, operand 1, single buffered']
    #allocation6 [shape = 's32[1]{0}', space=sflag, size = 0x4, scoped, tag = 'scoped memory for tpu_custom_call.1']
    #allocation7 [shape = 'u8[4096]{0}', space=vmem, size = 0x1000, scoped, tag = 'output window, operand 0, single buffered']
    %7 = vsyncpa [#allocation3], 0
    %8 = vsyncpa [#allocation6], 0
    %9 = vsyncpa [#allocation4], 0
    // Predicated region
    $region2: #{tpu_custom_call.1} parent=1 // pred_check
      _
    $region3: #{tpu_custom_call.1} parent=1 // pred_check_branch
      %11 = sbr.rel (0) target = $region5
    $region4: #{tpu_custom_call.1} parent=1 // pred_region
      %s13 = ssub.s32 128, 128
      %14 = vsyncadd [#allocation3], %s13
      %s15 = sshll.u32 [#allocation2], 4
      %s16 = int_to_ptr.vmem [resolvable:$true] %s15
      %21 = dma.hbm_to_vmem [thread:$0]  %s0, 128, %s16, [#allocation3], 64, 64, 4
    $region5: #{tpu_custom_call.1} parent=1 // pred_fallthru
      _
    // Predicated region
    $region6: #{tpu_custom_call.1} parent=1 // pred_check
      _
    $region7: #{tpu_custom_call.1} parent=1 // pred_check_branch
      %23 = sbr.rel (0) target = $region9
    $region8: #{tpu_custom_call.1} parent=1 // pred_region
      %s25 = ssub.s32 64, 64
      %26 = vsyncadd [#allocation6], %s25
      %s28 = sshll.u32 [#allocation5], 4
      %s29 = int_to_ptr.vmem [resolvable:$true] %s28
      %31 = dma.hbm_to_vmem [thread:$0]  %s1, 64, %s29, [#allocation6]
    $region9: #{tpu_custom_call.1} parent=1 // pred_fallthru
      _
    // Predicated region
    $region10: #{tpu_custom_call.1} parent=1 // pred_check
      _
    $region11: #{tpu_custom_call.1} parent=1 // pred_check_branch
      %33 = sbr.rel (0) target = $region13
    $region12: #{tpu_custom_call.1} parent=1 // pred_region
      %34 = dma.done [#allocation3], 128
    $region13: #{tpu_custom_call.1} parent=1 // pred_fallthru
      _
    // Predicated region
    $region14: #{tpu_custom_call.1} parent=1 // pred_check
      _
    $region15: #{tpu_custom_call.1} parent=1 // pred_check_branch
      %36 = sbr.rel (0) target = $region17
    $region16: #{tpu_custom_call.1} parent=1 // pred_region
      %37 = dma.done [#allocation6], 64
    $region17: #{tpu_custom_call.1} parent=1 // pred_fallthru
      _
    %v38 = vld [vmem:[#allocation2] sm:$0xf]
    %v39 = vld [vmem:[#allocation2 + $0x4] sm:$0xf]
    %v40 = vld [vmem:[#allocation5] sm:$0xf]
    %v41 = vadd.f32 %v38, %v40
    %v42 = vadd.f32 %v39, %v40
    %43 = vst [vmem:[#allocation7] sm:$0xf] %v41
    %44 = vst [vmem:[#allocation7 + $0x4] sm:$0xf] %v42
    // Predicated region
    $region18: #{tpu_custom_call.1} parent=1 // pred_check
      _
    $region19: #{tpu_custom_call.1} parent=1 // pred_check_branch
      %46 = sbr.rel (0) target = $region21
    $region20: #{tpu_custom_call.1} parent=1 // pred_region
      %s48 = ssub.s32 128, 128
      %49 = vsyncadd [#allocation4], %s48
      %s50 = sshll.u32 [#allocation7], 4
      %s51 = int_to_ptr.vmem [resolvable:$true] %s50
      %56 = dma.vmem_to_hbm [thread:$0]  %s51, 128, %s2, [#allocation4], 64, 64, 4
    $region21: #{tpu_custom_call.1} parent=1 // pred_fallthru
      _
    // Predicated region
    $region22: #{tpu_custom_call.1} parent=1 // pred_check
      _
    $region23: #{tpu_custom_call.1} parent=1 // pred_check_branch
      %58 = sbr.rel (0) target = $region25
    $region24: #{tpu_custom_call.1} parent=1 // pred_region
      %59 = dma.done [#allocation4], 128
    $region25: #{tpu_custom_call.1} parent=1 // pred_fallthru
      _
    %60 = vsyncpa [#allocation3], 1
    %61 = vsyncpa [#allocation6], 1
    %62 = vsyncpa [#allocation4], 1

</llo_original>
